<compile_context>
chip_gen: v5e
topology: v5e:2x2
jax: 0.10.0
libtpu: 0.0.40
codegen_flags: <defaults>
</compile_context>

<pallas_src>
import jax
import jax.numpy as jnp
from jax.experimental import pallas as pl
from jax.experimental.pallas import tpu as pltpu


def _swiglu_mlp_kernel(x_ref, wg_ref, wu_ref, wd_ref, o_ref, acc_ref):
    """Grid = (seq tiles i, intermediate tiles j); j is the reduction axis.

    x_ref : [tm, H]   input seq tile (block index constant along j)
    wg_ref: [H, ti]   gate_proj weight slab for intermediate tile j
    wu_ref: [H, ti]   up_proj weight slab
    wd_ref: [ti, H]   down_proj weight slab
    o_ref : [tm, H]   output tile (stored on the last j step)
    acc_ref:[tm, H]   f32 accumulator scratch (persists across grid steps)
    """
    j = pl.program_id(1)

    @pl.when(j == 0)
    def _():
        acc_ref[...] = jnp.zeros_like(acc_ref)

    x = x_ref[...]
    # Native-dtype MXU matmuls (bf16 fast path when weights are bf16),
    # accumulating in f32.
    gate = jnp.dot(x, wg_ref[...], preferred_element_type=jnp.float32)
    up = jnp.dot(x, wu_ref[...], preferred_element_type=jnp.float32)

    # SiLU in f32 (exp lands on the EUP), then cast the [tm, ti] intermediate
    # back to the weight dtype so down_proj also rides the fast MXU path.
    h = (gate * jax.nn.sigmoid(gate)) * up
    acc_ref[...] += jnp.dot(h.astype(wd_ref.dtype), wd_ref[...],
                            preferred_element_type=jnp.float32)

    @pl.when(j == pl.num_programs(1) - 1)
    def _():
        o_ref[...] = acc_ref[...].astype(o_ref.dtype)


def _pick_tile(total, candidates):
    for c in candidates:
        if total % c == 0:
            return c
    return total


def glm4_vision_mlp(x, w_gate, w_up, w_down, *, tile_m=None, tile_i=None):
    """x: [S, H]; w_gate/w_up: [H, I]; w_down: [I, H]  ->  [S, H]."""
    S, H = x.shape
    I = w_gate.shape[1]
    assert w_gate.shape == (H, I) and w_up.shape == (H, I)
    assert w_down.shape == (I, H)

    if tile_m is None:
        # ~256 rows keeps the MXU fed and enables seq-tile pipelining /
        # megacore sharding on real shapes; falls back to full S for toy sizes.
        tile_m = _pick_tile(S, (256, 128, 64, 32, 16, 8))
    if tile_i is None:
        # Stream the intermediate dim in slabs so weights never need to be
        # fully VMEM-resident (real GLM-4V: H~1.5K, I~13.7K would not fit).
        # 1024 is sized for v7x's 64 MiB VMEM; v5e/v6e can go larger.
        tile_i = _pick_tile(I, (1024, 512, 256, 128))
    # TODO(synk): pad S / I (masked final tile) for shapes not divisible by the
    # chosen tiles; current contract requires exact divisibility.
    assert S % tile_m == 0, (S, tile_m)
    assert I % tile_i == 0, (I, tile_i)

    grid = (S // tile_m, I // tile_i)
    return pl.pallas_call(
        _swiglu_mlp_kernel,
        out_shape=jax.ShapeDtypeStruct((S, H), x.dtype),
        grid_spec=pltpu.PrefetchScalarGridSpec(
            num_scalar_prefetch=0,
            grid=grid,
            in_specs=[
                pl.BlockSpec((tile_m, H), lambda i, j: (i, 0)),   # x seq tile
                pl.BlockSpec((H, tile_i), lambda i, j: (0, j)),   # gate W slab
                pl.BlockSpec((H, tile_i), lambda i, j: (0, j)),   # up W slab
                pl.BlockSpec((tile_i, H), lambda i, j: (j, 0)),   # down W slab
            ],
            out_specs=pl.BlockSpec((tile_m, H), lambda i, j: (i, 0)),
            scratch_shapes=[pltpu.VMEM((tile_m, H), jnp.float32)],
        ),
        compiler_params=pltpu.CompilerParams(
            dimension_semantics=("parallel", "arbitrary")),
    )(x, w_gate, w_up, w_down)


def _reference(x, w_gate, w_up, w_down):
    xf = x.astype(jnp.float32)
    g = xf @ w_gate.astype(jnp.float32)
    u = xf @ w_up.astype(jnp.float32)
    h = (g * jax.nn.sigmoid(g)) * u
    return (h @ w_down.astype(jnp.float32)).astype(x.dtype)


if __name__ == "__main__":
    # Small synthetic config: hidden_size=32, out_hidden_size (intermediate)=256,
    # seq=8 vision tokens, bias=False (module default).
    S, H, I = 8, 32, 256
    key = jax.random.PRNGKey(0)
    kx, kg, ku, kd = jax.random.split(key, 4)

    x_f32 = jax.random.normal(kx, (S, H), dtype=jnp.float32)
    w_gate_f32 = jax.random.normal(kg, (H, I), dtype=jnp.float32) * 0.05
    w_up_f32 = jax.random.normal(ku, (H, I), dtype=jnp.float32) * 0.05
    w_down_f32 = jax.random.normal(kd, (I, H), dtype=jnp.float32) * 0.05

    # --- f32 path (tight tolerance); tile_i=128 exercises the I-reduction. ---
    out_f32 = glm4_vision_mlp(x_f32, w_gate_f32, w_up_f32, w_down_f32,
                              tile_i=128)
    out_f32 = jax.block_until_ready(out_f32)
    ref_f32 = _reference(x_f32, w_gate_f32, w_up_f32, w_down_f32)
    assert out_f32.shape == (S, H)
    assert jnp.allclose(out_f32, ref_f32, atol=1e-4, rtol=1e-4), \
        "f32 mismatch vs reference"

    # --- bf16 path (native MXU operands, f32 accumulation; loose tolerance). ---
    x_bf = x_f32.astype(jnp.bfloat16)
    wg_bf = w_gate_f32.astype(jnp.bfloat16)
    wu_bf = w_up_f32.astype(jnp.bfloat16)
    wd_bf = w_down_f32.astype(jnp.bfloat16)
    out_bf = glm4_vision_mlp(x_bf, wg_bf, wu_bf, wd_bf, tile_i=128)
    out_bf = jax.block_until_ready(out_bf)
    ref_bf = _reference(x_bf, wg_bf, wu_bf, wd_bf)
    assert out_bf.shape == (S, H)
    assert jnp.allclose(out_bf.astype(jnp.float32),
                        ref_bf.astype(jnp.float32),
                        atol=3e-2, rtol=3e-2), "bf16 mismatch vs reference"

    print("KERNEL_OK")
</pallas_src>

<mosaic_0001>
module attributes {stable_mosaic.version = 11 : i64} {
  func.func @_swiglu_mlp_kernel(%arg0: i32, %arg1: i32, %arg2: memref<8x32xf32, #tpu.memory_space<vmem>>, %arg3: memref<32x128xf32, #tpu.memory_space<vmem>>, %arg4: memref<32x128xf32, #tpu.memory_space<vmem>>, %arg5: memref<128x32xf32, #tpu.memory_space<vmem>>, %arg6: memref<8x32xf32, #tpu.memory_space<vmem>>, %arg7: memref<8x32xf32, #tpu.memory_space<vmem>>) attributes {dimension_semantics = [#tpu.dimension_semantics<parallel>, #tpu.dimension_semantics<arbitrary>], iteration_bounds = array<i64: 1, 2>, scalar_prefetch = 0 : i64, scratch_operands = 1 : i64, tpu.core_type = #tpu.core_type<tc>, window_params = [{transform_indices = @transform_0, window_bounds = array<i64: 8, 32>}, {transform_indices = @transform_1, window_bounds = array<i64: 32, 128>}, {transform_indices = @transform_2, window_bounds = array<i64: 32, 128>}, {transform_indices = @transform_3, window_bounds = array<i64: 128, 32>}, {transform_indices = @transform_4, window_bounds = array<i64: 8, 32>}]} {
    %c0_i32 = arith.constant 0 : i32
    %0 = arith.cmpi eq, %arg1, %c0_i32 : i32
    %1 = arith.extui %0 : i1 to i32
    %c0_i32_0 = arith.constant 0 : i32
    %2 = arith.cmpi ne, %1, %c0_i32_0 : i32
    scf.if %2 {
      %cst_16 = arith.constant 0.000000e+00 : f32
      %23 = vector.broadcast %cst_16 : f32 to vector<8x32xf32>
      %c0_17 = arith.constant 0 : index
      %c0_18 = arith.constant 0 : index
      %24 = vector.load %arg7[%c0_17, %c0_18] : memref<8x32xf32, #tpu.memory_space<vmem>>, vector<8x32xf32>
      tpu.vector_store %arg7[%c0_17, %c0_18], %23 {strides = array<i32>} : memref<8x32xf32, #tpu.memory_space<vmem>>, vector<8x32xf32>,
    } else {
    }
    %c0 = arith.constant 0 : index
    %c0_1 = arith.constant 0 : index
    %3 = vector.load %arg2[%c0, %c0_1] : memref<8x32xf32, #tpu.memory_space<vmem>>, vector<8x32xf32>
    %c0_2 = arith.constant 0 : index
    %c0_3 = arith.constant 0 : index
    %4 = vector.load %arg3[%c0_2, %c0_3] : memref<32x128xf32, #tpu.memory_space<vmem>>, vector<32x128xf32>
    %cst = arith.constant dense<0.000000e+00> : vector<8x128xf32>
    %5 = tpu.matmul %3, %4, %cst {dimension_numbers = #tpu.dot_dimension_numbers<[1], [0], [0], [1], [0, 0, 1, 1], [], []>} : vector<8x32xf32>, vector<32x128xf32>, vector<8x128xf32> -> vector<8x128xf32>
    %c0_4 = arith.constant 0 : index
    %c0_5 = arith.constant 0 : index
    %6 = vector.load %arg4[%c0_4, %c0_5] : memref<32x128xf32, #tpu.memory_space<vmem>>, vector<32x128xf32>
    %cst_6 = arith.constant dense<0.000000e+00> : vector<8x128xf32>
    %7 = tpu.matmul %3, %6, %cst_6 {dimension_numbers = #tpu.dot_dimension_numbers<[1], [0], [0], [1], [0, 0, 1, 1], [], []>} : vector<8x32xf32>, vector<32x128xf32>, vector<8x128xf32> -> vector<8x128xf32>
    %8 = arith.negf %5 : vector<8x128xf32>
    %9 = math.exp %8 : vector<8x128xf32>
    %cst_7 = arith.constant 1.000000e+00 : f32
    %10 = vector.broadcast %cst_7 : f32 to vector<8x128xf32>
    %11 = arith.addf %10, %9 : vector<8x128xf32>
    %12 = arith.divf %10, %11 : vector<8x128xf32>
    %13 = arith.mulf %5, %12 : vector<8x128xf32>
    %14 = arith.mulf %13, %7 : vector<8x128xf32>
    %c0_8 = arith.constant 0 : index
    %c0_9 = arith.constant 0 : index
    %15 = vector.load %arg7[%c0_8, %c0_9] : memref<8x32xf32, #tpu.memory_space<vmem>>, vector<8x32xf32>
    %c0_10 = arith.constant 0 : index
    %c0_11 = arith.constant 0 : index
    %16 = vector.load %arg5[%c0_10, %c0_11] : memref<128x32xf32, #tpu.memory_space<vmem>>, vector<128x32xf32>
    %cst_12 = arith.constant dense<0.000000e+00> : vector<8x32xf32>
    %17 = tpu.matmul %14, %16, %cst_12 {dimension_numbers = #tpu.dot_dimension_numbers<[1], [0], [0], [1], [0, 0, 1, 1], [], []>} : vector<8x128xf32>, vector<128x32xf32>, vector<8x32xf32> -> vector<8x32xf32>
    %18 = arith.addf %15, %17 : vector<8x32xf32>
    %c0_13 = arith.constant 0 : index
    %c0_14 = arith.constant 0 : index
    %19 = vector.load %arg7[%c0_13, %c0_14] : memref<8x32xf32, #tpu.memory_space<vmem>>, vector<8x32xf32>
    tpu.vector_store %arg7[%c0_13, %c0_14], %18 {strides = array<i32>} : memref<8x32xf32, #tpu.memory_space<vmem>>, vector<8x32xf32>,
    %c1_i32 = arith.constant 1 : i32
    %20 = arith.cmpi eq, %arg1, %c1_i32 : i32
    %21 = arith.extui %20 : i1 to i32
    %c0_i32_15 = arith.constant 0 : i32
    %22 = arith.cmpi ne, %21, %c0_i32_15 : i32
    scf.if %22 {
      %c0_16 = arith.constant 0 : index
      %c0_17 = arith.constant 0 : index
      %23 = vector.load %arg7[%c0_16, %c0_17] : memref<8x32xf32, #tpu.memory_space<vmem>>, vector<8x32xf32>
      %c0_18 = arith.constant 0 : index
      %c0_19 = arith.constant 0 : index
      %24 = vector.load %arg6[%c0_18, %c0_19] : memref<8x32xf32, #tpu.memory_space<vmem>>, vector<8x32xf32>
      tpu.vector_store %arg6[%c0_18, %c0_19], %23 {strides = array<i32>} : memref<8x32xf32, #tpu.memory_space<vmem>>, vector<8x32xf32>,
    } else {
    }
    return
  }
  func.func @transform_0(%arg0: i32, %arg1: i32) -> (i32, i32) {
    %c0_i32 = arith.constant 0 : i32
    %c0_i32_0 = arith.constant 0 : i32
    return %arg0, %c0_i32 : i32, i32
  }
  func.func @transform_1(%arg0: i32, %arg1: i32) -> (i32, i32) {
    %c0_i32 = arith.constant 0 : i32
    %c0_i32_0 = arith.constant 0 : i32
    return %c0_i32, %arg1 : i32, i32
  }
  func.func @transform_2(%arg0: i32, %arg1: i32) -> (i32, i32) {
    %c0_i32 = arith.constant 0 : i32
    %c0_i32_0 = arith.constant 0 : i32
    return %c0_i32, %arg1 : i32, i32
  }
  func.func @transform_3(%arg0: i32, %arg1: i32) -> (i32, i32) {
    %c0_i32 = arith.constant 0 : i32
    %c0_i32_0 = arith.constant 0 : i32
    return %arg1, %c0_i32 : i32, i32
  }
  func.func @transform_4(%arg0: i32, %arg1: i32) -> (i32, i32) {
    %c0_i32 = arith.constant 0 : i32
    %c0_i32_0 = arith.constant 0 : i32
    return %arg0, %c0_i32 : i32, i32
  }
}

</mosaic_0001>

<llo_original>
// kernel: tpu_custom_call.1
$region0: #{tpu_custom_call.1}
  #allocation0 [shape = 'u32[]', space=smem, size = 0x4, offset = 0x4, fixed_abs, tag = 'smem constant byte address 0x4 - core index']
  #allocation1 [shape = 'u32[72,128]{1,0:T(1,128)}', space=vmem, size = 0x9000, scoped, tag = 'internal scratch']
  #allocation2 [shape = 'f32[8,32]{1,0:T(8,128)}', space=vmem, size = 0x1000, scoped, tag = 'scratch operand']
  %s0 = inlined_call_operand.vmem [shape: f32[8,32], index: 0, kind: input, shape index: {}]
  %s1 = inlined_call_operand.vmem [shape: f32[32,256], index: 1, kind: input, shape index: {}]
  %s2 = inlined_call_operand.vmem [shape: f32[32,256], index: 2, kind: input, shape index: {}]
  %s3 = inlined_call_operand.vmem [shape: f32[256,32], index: 3, kind: input, shape index: {}]
  %s4 = inlined_call_operand.hbm [shape: f32[8,32], index: 4, kind: output, shape index: {}]
  %s5 = sld [smem:[#allocation0]]
  $region133: #{tpu_custom_call.1} parent=0
    _
  %s7 = ssub.s32 1, %s5
  %s8 = scalar_select 0, %s7, %s5
  $region1: #{tpu_custom_call.1} parent=0
    #allocation3 [shape = 'u8[32768]{0}', space=vmem, size = 0x8000, scoped, tag = 'input window, operand 1']
    #allocation4 [shape = 'u8[32768]{0}', space=vmem, size = 0x8000, scoped, tag = 'input window, operand 2']
    #allocation5 [shape = 'u8[4096]{0}', space=vmem, size = 0x1000, scoped, tag = 'output window, operand 0, single buffered']
    #allocation6 [shape = 's32[2]{0}', space=sflag, size = 0x8, scoped, tag = 'scoped memory for tpu_custom_call.1']
    %9 = vsyncpa [#allocation6], 0
    loop: start=0, step=1, limit=4
    $region2: #{tpu_custom_call.1} parent=1 // loop_pre_header
      _
    $region3: #{tpu_custom_call.1} parent=1 // loop_header
      %s11 = sphi 0, %s15
      %p12 = scmp.ge.s32.totalorder %s11, 4
      %s18 = sphi 0, %s30
      %s19 = sphi 0, %s26
      %s20 = sphi 0, %s18
      %s21 = sphi 0, %s19
      %s22 = sphi 0, %s20
      %s23 = sphi 0, %s21
      %s33 = sphi 0, %s35
      %s36 = sphi 0, %s33
      %s37 = sphi 0, %s36
      %s53 = sphi 0, %s37
      %s59 = sphi 0, %s61
      %s62 = sphi 0, %s59
      %s63 = sphi 0, %s62
      %s79 = sphi 0, %s63
      %s85 = sphi 0, %s87
      %s88 = sphi 0, %s85
      %s89 = sphi 0, %s88
      %s105 = sphi 0, %s89
      %s111 = sphi 0, %s113
      %s114 = sphi 0, %s111
      %s115 = sphi 0, %s114
      %s131 = sphi 0, %s115
      %s137 = sphi 0, %s139
      %s140 = sphi 0, %s137
      %s141 = sphi 0, %s140
      %s157 = sphi 0, %s141
    $region4: #{tpu_custom_call.1} parent=1 // loop_header_branch
      %14 = sbr.rel (%p12) target = $region8
    $region5: #{tpu_custom_call.1} parent=1 // loop_body
      %s16 = ssub.s32 %s11, 1
      %s17 = ssub.s32 %s11, 2
      %s24 = sadd.s32 1, %s19
      %p25 = scmp.ge.s32.totalorder %s24, 2
      %s26 = scalar_select %p25, 0, %s24
      %s27 = sadd.s32 1, %s18
      %s28 = scalar_select %p25, %s27, %s18
      %p29 = scmp.ge.s32.totalorder %s28, 1
      %s30 = scalar_select %p29, 0, %s28
      %s31 = ssub.s32 %s18, %s30
      %p32 = scmp.eq.s32.totalorder %s31, 0
      %s34 = sadd.s32 %s33, 1
      %s35 = scalar_select %p32, %s33, %s34
      %p38 = pneg %p32
      %p39 = scmp.eq.s32.totalorder %s11, 1
      %p40 = por %p38, %p39
      %p41 = scmp.ne.s32.totalorder %s33, %s36
      %p42 = scmp.eq.s32.totalorder %s11, 0
      %p43 = por %p41, %p42
      %p44 = scmp.ne.s32.totalorder %s33, %s36
      %p45 = scmp.eq.s32.totalorder %s16, 1
      %p46 = por %p44, %p45
      %p47 = scmp.ne.s32.totalorder %s36, %s37
      %p48 = scmp.eq.s32.totalorder %s16, 0
      %p49 = por %p47, %p48
      %p50 = scmp.ne.s32.totalorder %s36, %s37
      %p51 = scmp.eq.s32.totalorder %s17, 1
      %p52 = por %p50, %p51
      %p54 = scmp.ne.s32.totalorder %s37, %s53
      %p55 = scmp.eq.s32.totalorder %s17, 0
      %p56 = por %p54, %p55
      %s57 = ssub.s32 %s19, %s26
      %p58 = scmp.eq.s32.totalorder %s57, 0
      %s60 = sadd.s32 %s59, 1
      %s61 = scalar_select %p58, %s59, %s60
      %p64 = pneg %p58
      %p65 = scmp.eq.s32.totalorder %s11, 1
      %p66 = por %p64, %p65
      %p67 = scmp.ne.s32.totalorder %s59, %s62
      %p68 = scmp.eq.s32.totalorder %s11, 0
      %p69 = por %p67, %p68
      %p70 = scmp.ne.s32.totalorder %s59, %s62
      %p71 = scmp.eq.s32.totalorder %s16, 1
      %p72 = por %p70, %p71
      %p73 = scmp.ne.s32.totalorder %s62, %s63
      %p74 = scmp.eq.s32.totalorder %s16, 0
      %p75 = por %p73, %p74
      %p76 = scmp.ne.s32.totalorder %s62, %s63
      %p77 = scmp.eq.s32.totalorder %s17, 1
      %p78 = por %p76, %p77
      %p80 = scmp.ne.s32.totalorder %s63, %s79
      %p81 = scmp.eq.s32.totalorder %s17, 0
      %p82 = por %p80, %p81
      %s83 = ssub.s32 %s19, %s26
      %p84 = scmp.eq.s32.totalorder %s83, 0
      %s86 = sadd.s32 %s85, 1
      %s87 = scalar_select %p84, %s85, %s86
      %p90 = pneg %p84
      %p91 = scmp.eq.s32.totalorder %s11, 1
      %p92 = por %p90, %p91
      %p93 = scmp.ne.s32.totalorder %s85, %s88
      %p94 = scmp.eq.s32.totalorder %s11, 0
      %p95 = por %p93, %p94
      %p96 = scmp.ne.s32.totalorder %s85, %s88
      %p97 = scmp.eq.s32.totalorder %s16, 1
      %p98 = por %p96, %p97
      %p99 = scmp.ne.s32.totalorder %s88, %s89
      %p100 = scmp.eq.s32.totalorder %s16, 0
      %p101 = por %p99, %p100
      %p102 = scmp.ne.s32.totalorder %s88, %s89
      %p103 = scmp.eq.s32.totalorder %s17, 1
      %p104 = por %p102, %p103
      %p106 = scmp.ne.s32.totalorder %s89, %s105
      %p107 = scmp.eq.s32.totalorder %s17, 0
      %p108 = por %p106, %p107
      %s109 = ssub.s32 %s19, %s26
      %p110 = scmp.eq.s32.totalorder %s109, 0
      %s112 = sadd.s32 %s111, 1
      %s113 = scalar_select %p110, %s111, %s112
      %p116 = pneg %p110
      %p117 = scmp.eq.s32.totalorder %s11, 1
      %p118 = por %p116, %p117
      %p119 = scmp.ne.s32.totalorder %s111, %s114
      %p120 = scmp.eq.s32.totalorder %s11, 0
      %p121 = por %p119, %p120
      %p122 = scmp.ne.s32.totalorder %s111, %s114
      %p123 = scmp.eq.s32.totalorder %s16, 1
      %p124 = por %p122, %p123
      %p125 = scmp.ne.s32.totalorder %s114, %s115
      %p126 = scmp.eq.s32.totalorder %s16, 0
      %p127 = por %p125, %p126
      %p128 = scmp.ne.s32.totalorder %s114, %s115
      %p129 = scmp.eq.s32.totalorder %s17, 1
      %p130 = por %p128, %p129
      %p132 = scmp.ne.s32.totalorder %s115, %s131
      %p133 = scmp.eq.s32.totalorder %s17, 0
      %p134 = por %p132, %p133
      %s135 = ssub.s32 %s18, %s30
      %p136 = scmp.eq.s32.totalorder %s135, 0
      %s138 = sadd.s32 %s137, 1
      %s139 = scalar_select %p136, %s137, %s138
      %p142 = pneg %p136
      %p143 = scmp.eq.s32.totalorder %s11, 1
      %p144 = por %p142, %p143
      %p145 = scmp.ne.s32.totalorder %s137, %s140
      %p146 = scmp.eq.s32.totalorder %s11, 0
      %p147 = por %p145, %p146
      %p148 = scmp.ne.s32.totalorder %s137, %s140
      %p149 = scmp.eq.s32.totalorder %s16, 1
      %p150 = por %p148, %p149
      %p151 = scmp.ne.s32.totalorder %s140, %s141
      %p152 = scmp.eq.s32.totalorder %s16, 0
      %p153 = por %p151, %p152
      %p154 = scmp.ne.s32.totalorder %s140, %s141
      %p155 = scmp.eq.s32.totalorder %s17, 1
      %p156 = por %p154, %p155
      %p158 = scmp.ne.s32.totalorder %s141, %s157
      %p159 = scmp.eq.s32.totalorder %s17, 0
      %p160 = por %p158, %p159
      %p161 = scmp.le.s32.totalorder 1, %s11
      %p162 = scmp.lt.s32.totalorder %s11, 3
      %p163 = pnand %p161, %p162
      %p164 = pneg %p163
      // Predicated region
      $region9: #{tpu_custom_call.1} parent=5 // pred_check
        _
      $region10: #{tpu_custom_call.1} parent=5 // pred_check_branch
        %166 = sbr.rel (%p163) target = $region12
      $region11: #{tpu_custom_call.1} parent=5 // pred_region
        %s167 = ssub.s32 %s11, 1
        // Predicated region
        $region13: #{tpu_custom_call.1} parent=11 // pred_check
          %p168 = pneg %p49
        $region14: #{tpu_custom_call.1} parent=11 // pred_check_branch
          %170 = sbr.rel (%p168) target = $region16
        $region15: #{tpu_custom_call.1} parent=11 // pred_region
          %p171 = scmp.lt.s32.totalorder %s20, 0
          %s172 = scalar_select %p171, %s20, 0
          %s173 = smul.addr %s172, 8
          %s174 = scalar_lea.vmem %s0, %s173
        $region16: #{tpu_custom_call.1} parent=11 // pred_fallthru
          _
      $region12: #{tpu_custom_call.1} parent=5 // pred_fallthru
        _
      %p175 = scmp.lt.s32.totalorder %s11, 2
      // Predicated region
      $region17: #{tpu_custom_call.1} parent=5 // pred_check
        %p176 = pneg %p175
      $region18: #{tpu_custom_call.1} parent=5 // pred_check_branch
        %178 = sbr.rel (%p176) target = $region20
      $region19: #{tpu_custom_call.1} parent=5 // pred_region
        // Predicated region
        $region21: #{tpu_custom_call.1} parent=19 // pred_check
          %p179 = pneg %p69
        $region22: #{tpu_custom_call.1} parent=19 // pred_check_branch
          %181 = sbr.rel (%p179) target = $region24
        $region23: #{tpu_custom_call.1} parent=19 // pred_region
          %s182 = sand.u32 %s59, 1
          %s183 = sand.u32 %s59, 1
          %s184 = smul.addr %s183, 32
          %s185 = scalar_lea.vmem [#allocation3], %s184
          %s186 = smul.addr %s19, 8
          %s187 = scalar_lea.vmem %s1, %s186
          // Predicated region
          $region25: #{tpu_custom_call.1} parent=23 // pred_check
            _
          $region26: #{tpu_custom_call.1} parent=23 // pred_check_branch
            %189 = sbr.rel (0) target = $region28
          $region27: #{tpu_custom_call.1} parent=23 // pred_region
            // Predicated region
            $region29: #{tpu_custom_call.1} parent=27 // pred_check
              _
            $region30: #{tpu_custom_call.1} parent=27 // pred_check_branch
              %191 = sbr.rel (0) target = $region32
            $region31: #{tpu_custom_call.1} parent=27 // pred_region
              // Predicated region
              $region44: #{tpu_custom_call.1} parent=31 // pred_check
                _
              $region45: #{tpu_custom_call.1} parent=31 // pred_check_branch
                %213 = sbr.rel (0) target = $region47
              $region46: #{tpu_custom_call.1} parent=31 // pred_region
                loop: start=0, step=1, limit=1
                $region48: #{tpu_custom_call.1} parent=46 // loop_pre_header
                  _
                $region49: #{tpu_custom_call.1} parent=46 // loop_header
                  %s215 = sphi 0, %s219
                  %p216 = scmp.ge.s32.totalorder %s215, 1
                  %s220 = sphi %s187, %s187
                  %s221 = sphi %s185, %s185
                $region50: #{tpu_custom_call.1} parent=46 // loop_header_branch
                  %218 = sbr.rel (%p216) target = $region54
                $region51: #{tpu_custom_call.1} parent=46 // loop_body
                  %v222 = vld [vmem:[%s220] sm:$0xff]
                  %223 = vst [vmem:[%s221] sm:$0xff] %v222
                  %v224 = vld [vmem:[%s220 + $0x10] sm:$0xff]
                  %225 = vst [vmem:[%s221 + $0x8] sm:$0xff] %v224
                  %v226 = vld [vmem:[%s220 + $0x20] sm:$0xff]
                  %227 = vst [vmem:[%s221 + $0x10] sm:$0xff] %v226
                  %v228 = vld [vmem:[%s220 + $0x30] sm:$0xff]
                  %229 = vst [vmem:[%s221 + $0x18] sm:$0xff] %v228
                $region52: #{tpu_custom_call.1} parent=46 // loop_footer
                  %s219 = sadd.s32 1, %s215
                $region53: #{tpu_custom_call.1} parent=46 // loop_footer_branch
                  %214 = sbr.rel target = $region49
                $region54: #{tpu_custom_call.1} parent=46 // loop_exit
                  _
              $region47: #{tpu_custom_call.1} parent=31 // pred_fallthru
                _
              // Predicated region
              $region55: #{tpu_custom_call.1} parent=31 // pred_check
                _
              $region56: #{tpu_custom_call.1} parent=31 // pred_check_branch
                %231 = sbr.rel target = $region58
              $region57: #{tpu_custom_call.1} parent=31 // pred_region
                _
              $region58: #{tpu_custom_call.1} parent=31 // pred_fallthru
                _
            $region32: #{tpu_custom_call.1} parent=27 // pred_fallthru
              _
            // Predicated region
            $region33: #{tpu_custom_call.1} parent=27 // pred_check
              _
            $region34: #{tpu_custom_call.1} parent=27 // pred_check_branch
              %193 = sbr.rel target = $region36
            $region35: #{tpu_custom_call.1} parent=27 // pred_region
              %s195 = ssub.s32 256, 1
              loop: start=0, step=1, limit=1
              $region37: #{tpu_custom_call.1} parent=35 // loop_pre_header
                _
              $region38: #{tpu_custom_call.1} parent=35 // loop_header
                %s197 = sphi 0, %s201
                %p198 = scmp.ge.s32.totalorder %s197, 1
                %s202 = sphi %s187, %s187
                %s203 = sphi %s185, %s185
              $region39: #{tpu_custom_call.1} parent=35 // loop_header_branch
                %200 = sbr.rel (%p198) target = $region43
              $region40: #{tpu_custom_call.1} parent=35 // loop_body
                %v204 = vld [vmem:[%s202] sm:%s195]
                %205 = vst [vmem:[%s203] sm:%s195] %v204
                %v206 = vld [vmem:[%s202 + $0x10] sm:%s195]
                %207 = vst [vmem:[%s203 + $0x8] sm:%s195] %v206
                %v208 = vld [vmem:[%s202 + $0x20] sm:%s195]
                %209 = vst [vmem:[%s203 + $0x10] sm:%s195] %v208
                %v210 = vld [vmem:[%s202 + $0x30] sm:%s195]
                %211 = vst [vmem:[%s203 + $0x18] sm:%s195] %v210
              $region41: #{tpu_custom_call.1} parent=35 // loop_footer
                %s201 = sadd.s32 1, %s197
              $region42: #{tpu_custom_call.1} parent=35 // loop_footer_branch
                %196 = sbr.rel target = $region38
              $region43: #{tpu_custom_call.1} parent=35 // loop_exit
                _
            $region36: #{tpu_custom_call.1} parent=27 // pred_fallthru
              _
          $region28: #{tpu_custom_call.1} parent=23 // pred_fallthru
            _
          %232 = vnop
        $region24: #{tpu_custom_call.1} parent=19 // pred_fallthru
          _
        // Predicated region
        $region59: #{tpu_custom_call.1} parent=19 // pred_check
          %p233 = pneg %p95
        $region60: #{tpu_custom_call.1} parent=19 // pred_check_branch
          %235 = sbr.rel (%p233) target = $region62
        $region61: #{tpu_custom_call.1} parent=19 // pred_region
          %s236 = sand.u32 %s85, 1
          %s237 = sand.u32 %s85, 1
          %s238 = smul.addr %s237, 32
          %s239 = scalar_lea.vmem [#allocation4], %s238
          %s240 = smul.addr %s19, 8
          %s241 = scalar_lea.vmem %s2, %s240
          // Predicated region
          $region63: #{tpu_custom_call.1} parent=61 // pred_check
            _
          $region64: #{tpu_custom_call.1} parent=61 // pred_check_branch
            %243 = sbr.rel (0) target = $region66
          $region65: #{tpu_custom_call.1} parent=61 // pred_region
            // Predicated region
            $region67: #{tpu_custom_call.1} parent=65 // pred_check
              _
            $region68: #{tpu_custom_call.1} parent=65 // pred_check_branch
              %245 = sbr.rel (0) target = $region70
            $region69: #{tpu_custom_call.1} parent=65 // pred_region
              // Predicated region
              $region82: #{tpu_custom_call.1} parent=69 // pred_check
                _
              $region83: #{tpu_custom_call.1} parent=69 // pred_check_branch
                %267 = sbr.rel (0) target = $region85
              $region84: #{tpu_custom_call.1} parent=69 // pred_region
                loop: start=0, step=1, limit=1
                $region86: #{tpu_custom_call.1} parent=84 // loop_pre_header
                  _
                $region87: #{tpu_custom_call.1} parent=84 // loop_header
                  %s269 = sphi 0, %s273
                  %p270 = scmp.ge.s32.totalorder %s269, 1
                  %s274 = sphi %s241, %s241
                  %s275 = sphi %s239, %s239
                $region88: #{tpu_custom_call.1} parent=84 // loop_header_branch
                  %272 = sbr.rel (%p270) target = $region92
                $region89: #{tpu_custom_call.1} parent=84 // loop_body
                  %v276 = vld [vmem:[%s274] sm:$0xff]
                  %277 = vst [vmem:[%s275] sm:$0xff] %v276
                  %v278 = vld [vmem:[%s274 + $0x10] sm:$0xff]
                  %279 = vst [vmem:[%s275 + $0x8] sm:$0xff] %v278
                  %v280 = vld [vmem:[%s274 + $0x20] sm:$0xff]
                  %281 = vst [vmem:[%s275 + $0x10] sm:$0xff] %v280
                  %v282 = vld [vmem:[%s274 + $0x30] sm:$0xff]
                  %283 = vst [vmem:[%s275 + $0x18] sm:$0xff] %v282
                $region90: #{tpu_custom_call.1} parent=84 // loop_footer
                  %s273 = sadd.s32 1, %s269
                $region91: #{tpu_custom_call.1} parent=84 // loop_footer_branch
                  %268 = sbr.rel target = $region87
                $region92: #{tpu_custom_call.1} parent=84 // loop_exit
                  _
              $region85: #{tpu_custom_call.1} parent=69 // pred_fallthru
                _
              // Predicated region
              $region93: #{tpu_custom_call.1} parent=69 // pred_check
                _
              $region94: #{tpu_custom_call.1} parent=69 // pred_check_branch
                %285 = sbr.rel target = $region96
              $region95: #{tpu_custom_call.1} parent=69 // pred_region
                _
              $region96: #{tpu_custom_call.1} parent=69 // pred_fallthru
                _
            $region70: #{tpu_custom_call.1} parent=65 // pred_fallthru
              _
            // Predicated region
            $region71: #{tpu_custom_call.1} parent=65 // pred_check
              _
            $region72: #{tpu_custom_call.1} parent=65 // pred_check_branch
              %247 = sbr.rel target = $region74
            $region73: #{tpu_custom_call.1} parent=65 // pred_region
              %s249 = ssub.s32 256, 1
              loop: start=0, step=1, limit=1
              $region75: #{tpu_custom_call.1} parent=73 // loop_pre_header
                _
              $region76: #{tpu_custom_call.1} parent=73 // loop_header
                %s251 = sphi 0, %s255
                %p252 = scmp.ge.s32.totalorder %s251, 1
                %s256 = sphi %s241, %s241
                %s257 = sphi %s239, %s239
              $region77: #{tpu_custom_call.1} parent=73 // loop_header_branch
                %254 = sbr.rel (%p252) target = $region81
              $region78: #{tpu_custom_call.1} parent=73 // loop_body
                %v258 = vld [vmem:[%s256] sm:%s249]
                %259 = vst [vmem:[%s257] sm:%s249] %v258
                %v260 = vld [vmem:[%s256 + $0x10] sm:%s249]
                %261 = vst [vmem:[%s257 + $0x8] sm:%s249] %v260
                %v262 = vld [vmem:[%s256 + $0x20] sm:%s249]
                %263 = vst [vmem:[%s257 + $0x10] sm:%s249] %v262
                %v264 = vld [vmem:[%s256 + $0x30] sm:%s249]
                %265 = vst [vmem:[%s257 + $0x18] sm:%s249] %v264
              $region79: #{tpu_custom_call.1} parent=73 // loop_footer
                %s255 = sadd.s32 1, %s251
              $region80: #{tpu_custom_call.1} parent=73 // loop_footer_branch
                %250 = sbr.rel target = $region76
              $region81: #{tpu_custom_call.1} parent=73 // loop_exit
                _
            $region74: #{tpu_custom_call.1} parent=65 // pred_fallthru
              _
          $region66: #{tpu_custom_call.1} parent=61 // pred_fallthru
            _
          %286 = vnop
        $region62: #{tpu_custom_call.1} parent=19 // pred_fallthru
          _
        // Predicated region
        $region97: #{tpu_custom_call.1} parent=19 // pred_check
          %p287 = pneg %p121
        $region98: #{tpu_custom_call.1} parent=19 // pred_check_branch
          %289 = sbr.rel (%p287) target = $region100
        $region99: #{tpu_custom_call.1} parent=19 // pred_region
          %s290 = smul.u32 16, %s19
          %p291 = scmp.lt.s32.totalorder %s290, 31
          %s292 = scalar_select %p291, %s290, 31
          %s293 = smul.addr %s292, 8
          %s294 = scalar_lea.vmem %s3, %s293
          %s295 = smul.u32 16, %s19
        $region100: #{tpu_custom_call.1} parent=19 // pred_fallthru
          _
      $region20: #{tpu_custom_call.1} parent=5 // pred_fallthru
        _
      %p296 = scmp.le.s32.totalorder 1, %s11
      %p297 = scmp.lt.s32.totalorder %s11, 3
      %p298 = pnand %p296, %p297
      %p299 = pneg %p298
      // Predicated region
      $region101: #{tpu_custom_call.1} parent=5 // pred_check
        _
      $region102: #{tpu_custom_call.1} parent=5 // pred_check_branch
        %301 = sbr.rel (%p298) target = $region104
      $region103: #{tpu_custom_call.1} parent=5 // pred_region
        %s302 = ssub.s32 %s11, 1
        %s303 = sand.u32 %s62, 1
        %s304 = sand.u32 %s62, 1
        %s305 = smul.addr %s304, 32
        %s306 = scalar_lea.vmem [#allocation3], %s305
        // Predicated region
        $region105: #{tpu_custom_call.1} parent=103 // pred_check
          %p307 = pneg %p75
        $region106: #{tpu_custom_call.1} parent=103 // pred_check_branch
          %309 = sbr.rel (%p307) target = $region108
        $region107: #{tpu_custom_call.1} parent=103 // pred_region
          _
        $region108: #{tpu_custom_call.1} parent=103 // pred_fallthru
          _
        %s310 = sand.u32 %s88, 1
        %s311 = sand.u32 %s88, 1
        %s312 = smul.addr %s311, 32
        %s313 = scalar_lea.vmem [#allocation4], %s312
        // Predicated region
        $region109: #{tpu_custom_call.1} parent=103 // pred_check
          %p314 = pneg %p101
        $region110: #{tpu_custom_call.1} parent=103 // pred_check_branch
          %316 = sbr.rel (%p314) target = $region112
        $region111: #{tpu_custom_call.1} parent=103 // pred_region
          _
        $region112: #{tpu_custom_call.1} parent=103 // pred_fallthru
          _
        %p317 = scmp.lt.s32.totalorder %s20, 0
        %s318 = scalar_select %p317, %s20, 0
        %s319 = smul.addr %s318, 8
        %s320 = scalar_lea.vmem %s0, %s319
        %p321 = pneg %p49
        %p322 = pneg %p46
        %s323 = sand.u32 %s62, 1
        %s324 = sand.u32 %s62, 1
        %s325 = smul.addr %s324, 32
        %s326 = scalar_lea.vmem [#allocation3], %s325
        %p327 = pneg %p75
        %p328 = pneg %p72
        %s329 = sand.u32 %s88, 1
        %s330 = sand.u32 %s88, 1
        %s331 = smul.addr %s330, 32
        %s332 = scalar_lea.vmem [#allocation4], %s331
        %p333 = pneg %p101
        %p334 = pneg %p98
        %s335 = smul.u32 16, %s21
        %p336 = scmp.lt.s32.totalorder %s335, 31
        %s337 = scalar_select %p336, %s335, 31
        %s338 = smul.addr %s337, 8
        %s339 = scalar_lea.vmem %s3, %s338
        %p340 = pneg %p127
        %p341 = pneg %p124
        %p342 = pneg %p153
        %p343 = pneg %p150
        %p344 = scmp.lt.s32.totalorder %s20, 0
        %s345 = scalar_select %p344, %s20, 0
        %s346 = smul.addr %s345, 8
        %s347 = scalar_lea.vmem %s0, %s346
        %s348 = smul.u32 16, %s21
        %p349 = scmp.lt.s32.totalorder %s348, 31
        %s350 = scalar_select %p349, %s348, 31
        %s351 = smul.addr %s350, 8
        %s352 = scalar_lea.vmem %s3, %s351
        %s353 = smul.u32 16, %s21
        %p354 = scmp.eq.s32.totalorder %s21, 0
        // Predicated region
        $region113: #{tpu_custom_call.1} parent=103 // pred_check
          %p355 = pneg %p354
        $region114: #{tpu_custom_call.1} parent=103 // pred_check_branch
          %357 = sbr.rel (%p355) target = $region116
        $region115: #{tpu_custom_call.1} parent=103 // pred_region
          %vm358 = vcmask 261120
          %359 = vst.msk [vmem:[#allocation2] sm:$0xff] %vm358, 0.0
        $region116: #{tpu_custom_call.1} parent=103 // pred_fallthru
          _
        %v360 = vld [vmem:[%s347] sm:$0xff]
        %v361 = vld [vmem:[%s306] sm:$0xff]
        %v362 = vld [vmem:[%s306 + $0x8] sm:$0xff]
        %v363 = vld [vmem:[%s306 + $0x10] sm:$0xff]
        %v364 = vld [vmem:[%s306 + $0x18] sm:$0xff]
        %vm365 = vcmask 261120
        %v367 = vsel %vm365, %v360, 0
        %369 = vmatpush.msra.mxu0 0.0
        %370 = vmatpush.msra.mxu0 0.0
        %371 = vmatpush.msra.mxu0 0.0
        %372 = vmatpush.msra.mxu0 0.0
        %373 = vmatpush.msra.mxu0 0.0
        %374 = vmatpush.msra.mxu0 0.0
        %375 = vmatpush.msra.mxu0 0.0
        %376 = vmatpush.msra.mxu0 0.0
        %377 = vmatpush.msra.mxu0 0.0
        %378 = vmatpush.msra.mxu0 0.0
        %379 = vmatpush.msra.mxu0 0.0
        %380 = vmatpush.msra.mxu0 0.0
        %381 = vmatpush.msra.mxu0 %v364
        %382 = vmatpush.msra.mxu0 %v363
        %383 = vmatpush.msra.mxu0 %v362
        %384 = vmatpush.msra.mxu0 %v361
        %385 = vmatmul.f32.gmra.mxu0 %v367
        %v386 = vpop.f32.mrf.mxu0
        %v387 = vadd.f32 0.0, %v386
        %388 = vdwg.mxu0
        %v389 = vld [vmem:[%s313] sm:$0xff]
        %v390 = vld [vmem:[%s313 + $0x8] sm:$0xff]
        %v391 = vld [vmem:[%s313 + $0x10] sm:$0xff]
        %v392 = vld [vmem:[%s313 + $0x18] sm:$0xff]
        %393 = vmatpush.msra.mxu0 0.0
        %394 = vmatpush.msra.mxu0 0.0
        %395 = vmatpush.msra.mxu0 0.0
        %396 = vmatpush.msra.mxu0 0.0
        %397 = vmatpush.msra.mxu0 0.0
        %398 = vmatpush.msra.mxu0 0.0
        %399 = vmatpush.msra.mxu0 0.0
        %400 = vmatpush.msra.mxu0 0.0
        %401 = vmatpush.msra.mxu0 0.0
        %402 = vmatpush.msra.mxu0 0.0
        %403 = vmatpush.msra.mxu0 0.0
        %404 = vmatpush.msra.mxu0 0.0
        %405 = vmatpush.msra.mxu0 %v392
        %406 = vmatpush.msra.mxu0 %v391
        %407 = vmatpush.msra.mxu0 %v390
        %408 = vmatpush.msra.mxu0 %v389
        %409 = vmatmul.f32.gmra.mxu0 %v367
        %v410 = vpop.f32.mrf.mxu0
        %v411 = vadd.f32 0.0, %v410
        %412 = vdwg.mxu0
        %v413 = vxor.u32 %v387, 2147483648
        %v414 = vmul.f32 %v413, 1.442695
        %v415 = vpow.pop %v414
        %v416 = vadd.f32 %v415, 1.0
        %v417 = vrcp.pop %v416
        %v418 = vmul.f32 %v416, %v417
        %v419 = vsub.f32 1.0, %v418
        %v420 = vmul.f32 %v417, %v419
        %v421 = vadd.f32 %v417, %v420
        %vm422 = vweird.f32 %v416
        %vm423 = vweird.f32 %v417
        %vm424 = vmor %vm422, %vm423
        %v425 = vsel %vm424, %v417, %v421
        %v426 = vand.u32 2147483647, %v416
        %vm427 = vcmp.eq.f32.partialorder %v426, 8.507059e+37
        %v428 = vand.u32 %v416, 2147483648
        %v429 = vor.u32 1.1754944e-38, %v428
        %v430 = vsel %vm427, %v429, %v425
        %v431 = vmul.f32 1.0, %v430
        %v432 = vmul.f32 %v387, %v431
        %v433 = vmul.f32 %v432, %v411
        %v434 = vld [vmem:[#allocation2] sm:$0xff]
        %v435 = vld [vmem:[%s352] sm:$0xff]
        %v436 = vld [vmem:[%s352 + $0x8] sm:$0xff]
        %v437 = vld [vmem:[%s352 + $0x10] sm:$0xff]
        %v438 = vld [vmem:[%s352 + $0x18] sm:$0xff]
        %v439 = vld [vmem:[%s352 + $0x20] sm:$0xff]
        %v440 = vld [vmem:[%s352 + $0x28] sm:$0xff]
        %v441 = vld [vmem:[%s352 + $0x30] sm:$0xff]
        %v442 = vld [vmem:[%s352 + $0x38] sm:$0xff]
        %v443 = vld [vmem:[%s352 + $0x40] sm:$0xff]
        %v444 = vld [vmem:[%s352 + $0x48] sm:$0xff]
        %v445 = vld [vmem:[%s352 + $0x50] sm:$0xff]
        %v446 = vld [vmem:[%s352 + $0x58] sm:$0xff]
        %v447 = vld [vmem:[%s352 + $0x60] sm:$0xff]
        %v448 = vld [vmem:[%s352 + $0x68] sm:$0xff]
        %v449 = vld [vmem:[%s352 + $0x70] sm:$0xff]
        %v450 = vld [vmem:[%s352 + $0x78] sm:$0xff]
        %451 = vmatpush.msra.mxu0 %v450
        %452 = vmatpush.msra.mxu0 %v449
        %453 = vmatpush.msra.mxu0 %v448
        %454 = vmatpush.msra.mxu0 %v447
        %455 = vmatpush.msra.mxu0 %v446
        %456 = vmatpush.msra.mxu0 %v445
        %457 = vmatpush.msra.mxu0 %v444
        %458 = vmatpush.msra.mxu0 %v443
        %459 = vmatpush.msra.mxu0 %v442
        %460 = vmatpush.msra.mxu0 %v441
        %461 = vmatpush.msra.mxu0 %v440
        %462 = vmatpush.msra.mxu0 %v439
        %463 = vmatpush.msra.mxu0 %v438
        %464 = vmatpush.msra.mxu0 %v437
        %465 = vmatpush.msra.mxu0 %v436
        %466 = vmatpush.msra.mxu0 %v435
        %467 = vmatmul.f32.gmra.mxu0 %v433
        %v468 = vpop.f32.mrf.mxu0
        %v469 = vadd.f32 0.0, %v468
        %470 = vdwg.mxu0
        %v471 = vadd.f32 %v434, %v469
        %472 = vst.msk [vmem:[#allocation2] sm:$0xff] %vm365, %v471
        %p473 = scmp.eq.s32.totalorder %s21, 1
        // Predicated region
        $region117: #{tpu_custom_call.1} parent=103 // pred_check
          %p474 = pneg %p473
        $region118: #{tpu_custom_call.1} parent=103 // pred_check_branch
          %476 = sbr.rel (%p474) target = $region120
        $region119: #{tpu_custom_call.1} parent=103 // pred_region
          %v477 = vld [vmem:[#allocation2] sm:$0xff]
          %478 = vst.msk [vmem:[#allocation5] sm:$0xff] %vm365, %v477
        $region120: #{tpu_custom_call.1} parent=103 // pred_fallthru
          _
        // Predicated region
        $region121: #{tpu_custom_call.1} parent=103 // pred_check
          %p479 = pneg %p150
        $region122: #{tpu_custom_call.1} parent=103 // pred_check_branch
          %481 = sbr.rel (%p479) target = $region124
        $region123: #{tpu_custom_call.1} parent=103 // pred_region
          %483 = vsyncadd [#allocation6], 0
          %s484 = smul.addr %s20, 8
          %s485 = scalar_lea.hbm %s4, %s484
          %s487 = sshll.u32 [#allocation5], 4
          %s488 = int_to_ptr.vmem [resolvable:$true] %s487
          %s489 = sshll.u32 %s485, 4
          %s490 = int_to_ptr.hbm [resolvable:$true] %s489
          %492 = dma.vmem_to_hbm [thread:$0]  %s488, 128, %s490, [#allocation6]
        $region124: #{tpu_custom_call.1} parent=103 // pred_fallthru
          _
        // Predicated region
        $region125: #{tpu_custom_call.1} parent=103 // pred_check
          %p493 = pneg %p150
        $region126: #{tpu_custom_call.1} parent=103 // pred_check_branch
          %495 = sbr.rel (%p493) target = $region128
        $region127: #{tpu_custom_call.1} parent=103 // pred_region
          %497 = dma.done [#allocation6], 128
        $region128: #{tpu_custom_call.1} parent=103 // pred_fallthru
          _
      $region104: #{tpu_custom_call.1} parent=5 // pred_fallthru
        _
      %p498 = scmp.le.s32.totalorder 2, %s11
      // Predicated region
      $region129: #{tpu_custom_call.1} parent=5 // pred_check
        %p499 = pneg %p498
      $region130: #{tpu_custom_call.1} parent=5 // pred_check_branch
        %501 = sbr.rel (%p499) target = $region132
      $region131: #{tpu_custom_call.1} parent=5 // pred_region
        %s502 = ssub.s32 %s11, 2
      $region132: #{tpu_custom_call.1} parent=5 // pred_fallthru
        _
    $region6: #{tpu_custom_call.1} parent=1 // loop_footer
      %s15 = sadd.s32 1, %s11
    $region7: #{tpu_custom_call.1} parent=1 // loop_footer_branch
      %10 = sbr.rel target = $region3
    $region8: #{tpu_custom_call.1} parent=1 // loop_exit
      _
    %503 = vsyncpa [#allocation6], 1
    %s504 = scalar_lea.sflag [#allocation6], 1
    %505 = vsyncpa %s504, 1

</llo_original>
